<compile_context>
chip_gen: v5e
topology: v5e:2x2
jax: 0.10.0
libtpu: 0.0.40
codegen_flags: <defaults>
</compile_context>

<pallas_src>
import functools
import math

import numpy as np
import jax
import jax.numpy as jnp
from jax.experimental import pallas as pl
from jax.experimental.pallas import tpu as pltpu


# ----------------------------------------------------------------------------
# Interpolation-weight construction (host-side glue, cached).
# Reproduces PyTorch's upsample_bilinear2d / upsample_nearest2d index math.
# ----------------------------------------------------------------------------
@functools.lru_cache(maxsize=None)
def _bilinear_weights(in_size: int, out_size: int, scale: float) -> np.ndarray:
    """W[out, in] s.t. y = W @ x matches F.interpolate(mode='bilinear',
    align_corners=False) along one axis.  `scale` is PyTorch's
    area_pixel_compute_scale value (1/scale_factor if given, else in/out)."""
    dst = np.arange(out_size, dtype=np.float64)
    src = scale * (dst + 0.5) - 0.5
    src = np.maximum(src, 0.0)                       # PyTorch clamps negatives
    i0 = np.minimum(np.floor(src).astype(np.int64), in_size - 1)
    i1 = np.minimum(i0 + 1, in_size - 1)
    lam = src - i0
    w = np.zeros((out_size, in_size), dtype=np.float32)
    rows = np.arange(out_size)
    np.add.at(w, (rows, i0), (1.0 - lam).astype(np.float32))
    np.add.at(w, (rows, i1), lam.astype(np.float32))
    return w


@functools.lru_cache(maxsize=None)
def _nearest_weights(in_size: int, out_size: int, scale: float) -> np.ndarray:
    """W[out, in] selection matrix matching legacy mode='nearest':
    src = min(floor(dst * scale), in-1), scale = 1/scale_factor or in/out."""
    dst = np.arange(out_size, dtype=np.float64)
    src = np.minimum(np.floor(dst * scale).astype(np.int64), in_size - 1)
    w = np.zeros((out_size, in_size), dtype=np.float32)
    w[np.arange(out_size), src] = 1.0
    return w


def _resolve(x_shape, mode, size, scale_factor):
    """Output sizes + separable resize matrices (PyTorch semantics)."""
    _, _, H, W = x_shape
    if size is not None:
        if isinstance(size, (tuple, list)):
            H_out, W_out = int(size[0]), int(size[1])
        else:
            H_out = W_out = int(size)
        sh = sw = None
    else:
        if scale_factor is None:
            raise ValueError("either size or scale_factor must be given")
        if isinstance(scale_factor, (tuple, list)):
            sh, sw = float(scale_factor[0]), float(scale_factor[1])
        else:
            sh = sw = float(scale_factor)
        H_out = int(math.floor(H * sh))
        W_out = int(math.floor(W * sw))
    scale_h = (1.0 / sh) if sh is not None else (H / H_out)
    scale_w = (1.0 / sw) if sw is not None else (W / W_out)

    if mode == "bilinear":
        wy = _bilinear_weights(H, H_out, float(scale_h))
        wx = _bilinear_weights(W, W_out, float(scale_w))
    elif mode == "nearest":
        # TODO(synk): a gather/repeat (non-MXU) path for 'nearest' would avoid
        # selection-matrix matmuls on large images (the op is purely HBM-bound).
        wy = _nearest_weights(H, H_out, float(scale_h))
        wx = _nearest_weights(W, W_out, float(scale_w))
    else:
        # TODO(synk): bicubic / area / trilinear / nearest-exact / antialias
        # are not implemented.
        raise NotImplementedError(f"mode={mode}")
    return H_out, W_out, wy, wx


# ----------------------------------------------------------------------------
# Pallas kernel: B slabs per grid step, two batched MXU contractions, f32 acc.
# ----------------------------------------------------------------------------
def _resize_kernel(x_ref, wy_ref, wxt_ref, o_ref):
    # x_ref:   (B, H, W)         input slabs (natural NCHW layout)
    # wy_ref:  (H_out, H)        row-resize weights (f32, constant block)
    # wxt_ref: (W, W_out)        column-resize weights, transposed (f32)
    # o_ref:   (B, H_out, W_out)
    b = x_ref.shape[0]
    x = x_ref[...].astype(jnp.float32)
    wxt = jnp.broadcast_to(wxt_ref[...][None, :, :], (b,) + tuple(wxt_ref.shape))
    # per-slab column resize: (B,H,W) x (B,W,W_out) -> (B,H,W_out)
    t = jnp.einsum("bhw,bwk->bhk", x, wxt, preferred_element_type=jnp.float32)
    wy = jnp.broadcast_to(wy_ref[...][None, :, :], (b,) + tuple(wy_ref.shape))
    # per-slab row resize:    (B,H_out,H) x (B,H,W_out) -> (B,H_out,W_out)
    y = jnp.einsum("boh,bhk->bok", wy, t, preferred_element_type=jnp.float32)
    o_ref[...] = y.astype(o_ref.dtype)


def f_interpolate(x: jax.Array, mode: str = "bilinear",
                  scale_factor=None, size=None) -> jax.Array:
    """Pallas TPU equivalent of FInterpolate(mode, size, scale_factor)(x), NCHW."""
    N, C, H, W = x.shape
    H_out, W_out, wy, wx = _resolve(x.shape, mode, size, scale_factor)
    NC = N * C
    itemsize = np.dtype(x.dtype).itemsize

    # ---------------- VMEM model & slab-batch (B) selection ------------------
    try:
        vmem_cap = int(pltpu.get_tpu_info().vmem_capacity_bytes)
    except Exception:
        vmem_cap = 64 * 1024 * 1024              # v7x per-core VMEM (worst case)
    data_budget = min((vmem_cap * 2) // 3, 48 * 1024 * 1024)

    def _pad2(rows, cols, esz):
        # (sublane, 128-lane) tile padding of the minor two dims in VMEM.
        sub = {1: 32, 2: 16, 4: 8}.get(esz, 8)
        return (pl.cdiv(rows, sub) * sub) * (pl.cdiv(cols, 128) * 128) * esz

    def _vmem_needed(b):
        io = 2 * b * (_pad2(H, W, itemsize) + _pad2(H_out, W_out, itemsize))
        wts = 2 * (_pad2(H_out, H, 4) + _pad2(W, W_out, 4))     # const, dbl-buffered
        tmp = b * (_pad2(W, W_out, 4) + _pad2(H, W_out, 4)      # bcast Wx^T, t
                   + _pad2(H_out, H, 4) + _pad2(H_out, W_out, 4))  # bcast Wy, y
        if itemsize != 4:
            tmp += b * _pad2(H, W, 4)                           # f32 copy of x
        return io + wts + tmp

    b_cap = min(NC, 256)                         # keep batched-matmul unroll sane
    if NC > 1:
        b_cap = min(b_cap, pl.cdiv(NC, 2))       # grid_len >= 2 -> both v7x TCs busy
    B = 1
    for b in range(b_cap, 0, -1):
        if _vmem_needed(b) <= data_budget:
            B = b
            break
    grid_len = pl.cdiv(NC, B)
    # TODO(synk): a single slab larger than the VMEM budget would need extra
    # spatial (H) tiling; not required for the shapes exercised here.

    vmem_limit = int(min(vmem_cap - (4 << 20),
                         max(_vmem_needed(B) + (16 << 20), 32 << 20)))

    wy_j = jnp.asarray(wy, dtype=jnp.float32)    # (H_out, H)
    wxt_j = jnp.asarray(wx.T, dtype=jnp.float32)  # (W, W_out)
    x3 = x.reshape(NC, H, W)                     # free, contiguous view

    nc_exec = grid_len * B                       # includes edge-block padding
    cost = pl.CostEstimate(
        flops=int(2 * nc_exec * W_out * H * (W + H_out)),
        transcendentals=0,
        bytes_accessed=int(x.size * itemsize + NC * H_out * W_out * itemsize
                           + (wy_j.size + wxt_j.size) * 4),
    )

    out3 = pl.pallas_call(
        _resize_kernel,
        out_shape=jax.ShapeDtypeStruct((NC, H_out, W_out), x.dtype),
        grid=(grid_len,),
        in_specs=[
            pl.BlockSpec((B, H, W), lambda i: (i, 0, 0)),
            pl.BlockSpec((H_out, H), lambda i: (0, 0)),   # constant-index block
            pl.BlockSpec((W, W_out), lambda i: (0, 0)),   # constant-index block
        ],
        out_specs=pl.BlockSpec((B, H_out, W_out), lambda i: (i, 0, 0)),
        compiler_params=pltpu.CompilerParams(
            dimension_semantics=("parallel",),
            vmem_limit_bytes=vmem_limit,
        ),
        cost_estimate=cost,
    )(x3, wy_j, wxt_j)

    return out3.reshape(N, C, H_out, W_out)


# ----------------------------------------------------------------------------
# References for sanity checks.
# ----------------------------------------------------------------------------
def _ref_interpolate(x, mode="bilinear", scale_factor=None, size=None):
    """Pure-JAX reference built from the same separable weights."""
    H_out, W_out, wy, wx = _resolve(x.shape, mode, size, scale_factor)
    y = jnp.einsum("oh,nchw,wk->ncok", jnp.asarray(wy),
                   x.astype(jnp.float32), jnp.asarray(wx.T))
    return y.astype(x.dtype)


def _np_bilinear(x, H_out, W_out, scale_h, scale_w):
    """Independent per-pixel NumPy bilinear (align_corners=False) reference."""
    x = np.asarray(x, dtype=np.float64)
    H, W = x.shape[-2:]
    sh = np.maximum(scale_h * (np.arange(H_out) + 0.5) - 0.5, 0.0)
    h0 = np.minimum(np.floor(sh).astype(int), H - 1)
    h1 = np.minimum(h0 + 1, H - 1)
    lh = (sh - h0)[:, None]
    sw = np.maximum(scale_w * (np.arange(W_out) + 0.5) - 0.5, 0.0)
    w0 = np.minimum(np.floor(sw).astype(int), W - 1)
    w1 = np.minimum(w0 + 1, W - 1)
    lw = sw - w0
    top = x[..., h0, :][..., :, w0] * (1 - lw) + x[..., h0, :][..., :, w1] * lw
    bot = x[..., h1, :][..., :, w0] * (1 - lw) + x[..., h1, :][..., :, w1] * lw
    return top * (1 - lh) + bot * lh


if __name__ == "__main__":
    key = jax.random.PRNGKey(0)
    N, C, H, W = 2, 4, 16, 16
    x = jax.random.normal(key, (N, C, H, W), dtype=jnp.float32)

    # bilinear, scale_factor=2 (PyTorch default align_corners=False)
    y_bl = jax.block_until_ready(f_interpolate(x, mode="bilinear", scale_factor=2.0))
    assert y_bl.shape == (N, C, 32, 32)
    np.testing.assert_allclose(
        np.asarray(y_bl),
        np.asarray(_ref_interpolate(x, "bilinear", scale_factor=2.0)),
        rtol=1e-5, atol=1e-5)
    np.testing.assert_allclose(
        np.asarray(y_bl), _np_bilinear(np.asarray(x), 32, 32, 0.5, 0.5),
        rtol=1e-5, atol=1e-5)

    # bilinear with an explicit (non power-of-two) output size
    y_sz = jax.block_until_ready(f_interpolate(x, mode="bilinear", size=(24, 40)))
    assert y_sz.shape == (N, C, 24, 40)
    np.testing.assert_allclose(
        np.asarray(y_sz), _np_bilinear(np.asarray(x), 24, 40, H / 24, W / 40),
        rtol=1e-5, atol=1e-5)

    # nearest, scale_factor=2 (== 2x repeat along H and W)
    y_nn = jax.block_until_ready(f_interpolate(x, mode="nearest", scale_factor=2.0))
    assert y_nn.shape == (N, C, 32, 32)
    ref_nn = np.repeat(np.repeat(np.asarray(x), 2, axis=2), 2, axis=3)
    np.testing.assert_allclose(np.asarray(y_nn), ref_nn, rtol=1e-6, atol=1e-6)

    print("KERNEL_OK")
</pallas_src>

<mosaic_0001>
module attributes {stable_mosaic.version = 11 : i64} {
  func.func @_resize_kernel(%arg0: i32, %arg1: memref<4x16x16xf32, #tpu.memory_space<vmem>>, %arg2: memref<32x16xf32, #tpu.memory_space<vmem>>, %arg3: memref<16x32xf32, #tpu.memory_space<vmem>>, %arg4: memref<4x32x32xf32, #tpu.memory_space<vmem>>) attributes {dimension_semantics = [#tpu.dimension_semantics<parallel>], iteration_bounds = array<i64: 2>, scalar_prefetch = 0 : i64, scratch_operands = 0 : i64, tpu.core_type = #tpu.core_type<tc>, window_params = [{transform_indices = @transform_0, window_bounds = array<i64: 4, 16, 16>}, {pipeline_mode = #tpu.pipeline_mode<synchronous>, transform_indices = @transform_1, window_bounds = array<i64: 32, 16>}, {pipeline_mode = #tpu.pipeline_mode<synchronous>, transform_indices = @transform_2, window_bounds = array<i64: 16, 32>}, {transform_indices = @transform_3, window_bounds = array<i64: 4, 32, 32>}]} {
    %c0 = arith.constant 0 : index
    %c0_0 = arith.constant 0 : index
    %c0_1 = arith.constant 0 : index
    %0 = vector.load %arg1[%c0, %c0_0, %c0_1] : memref<4x16x16xf32, #tpu.memory_space<vmem>>, vector<4x16x16xf32>
    %c0_2 = arith.constant 0 : index
    %c0_3 = arith.constant 0 : index
    %1 = vector.load %arg3[%c0_2, %c0_3] : memref<16x32xf32, #tpu.memory_space<vmem>>, vector<16x32xf32>
    %2 = vector.shape_cast %1 : vector<16x32xf32> to vector<1x16x32xf32>
    %3 = vector.shape_cast %2 : vector<1x16x32xf32> to vector<1x16x32xf32>
    %4 = vector.broadcast %3 : vector<1x16x32xf32> to vector<4x16x32xf32>
    "tpu.trace_start"() <{level = 10 : i32, message = "bhw,bwk->bhk"}> : () -> ()
    %cst = arith.constant dense<0.000000e+00> : vector<4x16x32xf32>
    %5 = tpu.matmul %0, %4, %cst {dimension_numbers = #tpu.dot_dimension_numbers<[2], [1], [1], [2], [0, 0, 0, 1, 1, 2], [0], [0]>} : vector<4x16x16xf32>, vector<4x16x32xf32>, vector<4x16x32xf32> -> vector<4x16x32xf32>
    "tpu.trace_stop"() : () -> ()
    %c0_4 = arith.constant 0 : index
    %c0_5 = arith.constant 0 : index
    %6 = vector.load %arg2[%c0_4, %c0_5] : memref<32x16xf32, #tpu.memory_space<vmem>>, vector<32x16xf32>
    %7 = vector.shape_cast %6 : vector<32x16xf32> to vector<1x32x16xf32>
    %8 = vector.shape_cast %7 : vector<1x32x16xf32> to vector<1x32x16xf32>
    %9 = vector.broadcast %8 : vector<1x32x16xf32> to vector<4x32x16xf32>
    "tpu.trace_start"() <{level = 10 : i32, message = "boh,bhk->bok"}> : () -> ()
    %cst_6 = arith.constant dense<0.000000e+00> : vector<4x32x32xf32>
    %10 = tpu.matmul %9, %5, %cst_6 {dimension_numbers = #tpu.dot_dimension_numbers<[2], [1], [1], [2], [0, 0, 0, 1, 1, 2], [0], [0]>} : vector<4x32x16xf32>, vector<4x16x32xf32>, vector<4x32x32xf32> -> vector<4x32x32xf32>
    "tpu.trace_stop"() : () -> ()
    %c0_7 = arith.constant 0 : index
    %c0_8 = arith.constant 0 : index
    %c0_9 = arith.constant 0 : index
    %11 = vector.load %arg4[%c0_7, %c0_8, %c0_9] : memref<4x32x32xf32, #tpu.memory_space<vmem>>, vector<4x32x32xf32>
    tpu.vector_store %arg4[%c0_7, %c0_8, %c0_9], %10 {strides = array<i32>} : memref<4x32x32xf32, #tpu.memory_space<vmem>>, vector<4x32x32xf32>,
    return
  }
  func.func @transform_0(%arg0: i32) -> (i32, i32, i32) {
    %c0_i32 = arith.constant 0 : i32
    %c0_i32_0 = arith.constant 0 : i32
    %c0_i32_1 = arith.constant 0 : i32
    return %arg0, %c0_i32, %c0_i32_0 : i32, i32, i32
  }
  func.func @transform_1(%arg0: i32) -> (i32, i32) {
    %c0_i32 = arith.constant 0 : i32
    %c0_i32_0 = arith.constant 0 : i32
    %c0_i32_1 = arith.constant 0 : i32
    return %c0_i32, %c0_i32_0 : i32, i32
  }
  func.func @transform_2(%arg0: i32) -> (i32, i32) {
    %c0_i32 = arith.constant 0 : i32
    %c0_i32_0 = arith.constant 0 : i32
    %c0_i32_1 = arith.constant 0 : i32
    return %c0_i32, %c0_i32_0 : i32, i32
  }
  func.func @transform_3(%arg0: i32) -> (i32, i32, i32) {
    %c0_i32 = arith.constant 0 : i32
    %c0_i32_0 = arith.constant 0 : i32
    %c0_i32_1 = arith.constant 0 : i32
    return %arg0, %c0_i32, %c0_i32_0 : i32, i32, i32
  }
}

</mosaic_0001>

<llo_original>
// kernel: tpu_custom_call.1
$region0: #{tpu_custom_call.1}
  #allocation0 [shape = 'u32[]', space=smem, size = 0x4, offset = 0x4, fixed_abs, tag = 'smem constant byte address 0x4 - core index']
  #allocation1 [shape = 'u32[72,128]{1,0:T(1,128)}', space=vmem, size = 0x9000, scoped, tag = 'internal scratch']
  %s0 = inlined_call_operand.hbm [shape: f32[8,16,16], index: 0, kind: input, shape index: {}]
  %s1 = inlined_call_operand.vmem [shape: f32[32,16], index: 1, kind: input, shape index: {}]
  %s2 = inlined_call_operand.vmem [shape: f32[16,32], index: 2, kind: input, shape index: {}]
  %s3 = inlined_call_operand.hbm [shape: f32[8,32,32], index: 3, kind: output, shape index: {}]
  %s4 = sld [smem:[#allocation0]]
  $region49: #{tpu_custom_call.1} parent=0
    _
  %s6 = ssub.s32 1, %s4
  %s7 = scalar_select 0, %s6, %s4
  $region1: #{tpu_custom_call.1} parent=0
    #allocation2 [shape = 'u8[65536]{0}', space=vmem, size = 0x10000, scoped, tag = 'input window, operand 0']
    #allocation3 [shape = 's32[2]{0}', space=sflag, size = 0x8, scoped, tag = 'scoped memory for tpu_custom_call.1']
    #allocation4 [shape = 's32[2]{0}', space=sflag, size = 0x8, scoped, tag = 'scoped memory for tpu_custom_call.1']
    #allocation5 [shape = 'u8[131072]{0}', space=vmem, size = 0x20000, scoped, tag = 'output window, operand 0']
    %8 = vsyncpa [#allocation3], 0
    %s9 = scalar_lea.sflag [#allocation3], 1
    %10 = vsyncpa %s9, 0
    %11 = vsyncpa [#allocation4], 0
    %s12 = scalar_lea.sflag [#allocation4], 1
    %13 = vsyncpa %s12, 0
    loop: start=0, step=1, limit=4
    $region2: #{tpu_custom_call.1} parent=1 // loop_pre_header
      _
    $region3: #{tpu_custom_call.1} parent=1 // loop_header
      %s15 = sphi 0, %s19
      %p16 = scmp.ge.s32.totalorder %s15, 4
      %s25 = sphi 0, %s27
      %s28 = sphi 0, %s25
      %s29 = sphi 0, %s28
      %s45 = sphi 0, %s29
      %s49 = sphi 0, %s49
      %s51 = sphi 0, %s49
      %s52 = sphi 0, %s51
      %s66 = sphi 0, %s52
      %s70 = sphi 0, %s70
      %s72 = sphi 0, %s70
      %s73 = sphi 0, %s72
      %s87 = sphi 0, %s73
      %s93 = sphi 0, %s95
      %s96 = sphi 0, %s93
      %s97 = sphi 0, %s96
      %s113 = sphi 0, %s97
    $region4: #{tpu_custom_call.1} parent=1 // loop_header_branch
      %18 = sbr.rel (%p16) target = $region8
    $region5: #{tpu_custom_call.1} parent=1 // loop_body
      %s20 = ssub.s32 %s15, 1
      %s21 = ssub.s32 %s15, 2
      %s22 = sadd.s32 %s15, 1
      %s23 = ssub.s32 %s15, %s22
      %p24 = scmp.eq.s32.totalorder %s23, 0
      %s26 = sadd.s32 %s25, 1
      %s27 = scalar_select %p24, %s25, %s26
      %p30 = pneg %p24
      %p31 = scmp.eq.s32.totalorder %s15, 1
      %p32 = por %p30, %p31
      %p33 = scmp.ne.s32.totalorder %s25, %s28
      %p34 = scmp.eq.s32.totalorder %s15, 0
      %p35 = por %p33, %p34
      %p36 = scmp.ne.s32.totalorder %s25, %s28
      %p37 = scmp.eq.s32.totalorder %s20, 1
      %p38 = por %p36, %p37
      %p39 = scmp.ne.s32.totalorder %s28, %s29
      %p40 = scmp.eq.s32.totalorder %s20, 0
      %p41 = por %p39, %p40
      %p42 = scmp.ne.s32.totalorder %s28, %s29
      %p43 = scmp.eq.s32.totalorder %s21, 1
      %p44 = por %p42, %p43
      %p46 = scmp.ne.s32.totalorder %s29, %s45
      %p47 = scmp.eq.s32.totalorder %s21, 0
      %p48 = por %p46, %p47
      %s50 = sadd.s32 %s49, 1
      %p53 = scmp.eq.s32.totalorder %s15, 1
      %p54 = scmp.ne.s32.totalorder %s49, %s51
      %p55 = scmp.eq.s32.totalorder %s15, 0
      %p56 = por %p54, %p55
      %p57 = scmp.ne.s32.totalorder %s49, %s51
      %p58 = scmp.eq.s32.totalorder %s20, 1
      %p59 = por %p57, %p58
      %p60 = scmp.ne.s32.totalorder %s51, %s52
      %p61 = scmp.eq.s32.totalorder %s20, 0
      %p62 = por %p60, %p61
      %p63 = scmp.ne.s32.totalorder %s51, %s52
      %p64 = scmp.eq.s32.totalorder %s21, 1
      %p65 = por %p63, %p64
      %p67 = scmp.ne.s32.totalorder %s52, %s66
      %p68 = scmp.eq.s32.totalorder %s21, 0
      %p69 = por %p67, %p68
      %s71 = sadd.s32 %s70, 1
      %p74 = scmp.eq.s32.totalorder %s15, 1
      %p75 = scmp.ne.s32.totalorder %s70, %s72
      %p76 = scmp.eq.s32.totalorder %s15, 0
      %p77 = por %p75, %p76
      %p78 = scmp.ne.s32.totalorder %s70, %s72
      %p79 = scmp.eq.s32.totalorder %s20, 1
      %p80 = por %p78, %p79
      %p81 = scmp.ne.s32.totalorder %s72, %s73
      %p82 = scmp.eq.s32.totalorder %s20, 0
      %p83 = por %p81, %p82
      %p84 = scmp.ne.s32.totalorder %s72, %s73
      %p85 = scmp.eq.s32.totalorder %s21, 1
      %p86 = por %p84, %p85
      %p88 = scmp.ne.s32.totalorder %s73, %s87
      %p89 = scmp.eq.s32.totalorder %s21, 0
      %p90 = por %p88, %p89
      %s91 = ssub.s32 %s15, %s22
      %p92 = scmp.eq.s32.totalorder %s91, 0
      %s94 = sadd.s32 %s93, 1
      %s95 = scalar_select %p92, %s93, %s94
      %p98 = pneg %p92
      %p99 = scmp.eq.s32.totalorder %s15, 1
      %p100 = por %p98, %p99
      %p101 = scmp.ne.s32.totalorder %s93, %s96
      %p102 = scmp.eq.s32.totalorder %s15, 0
      %p103 = por %p101, %p102
      %p104 = scmp.ne.s32.totalorder %s93, %s96
      %p105 = scmp.eq.s32.totalorder %s20, 1
      %p106 = por %p104, %p105
      %p107 = scmp.ne.s32.totalorder %s96, %s97
      %p108 = scmp.eq.s32.totalorder %s20, 0
      %p109 = por %p107, %p108
      %p110 = scmp.ne.s32.totalorder %s96, %s97
      %p111 = scmp.eq.s32.totalorder %s21, 1
      %p112 = por %p110, %p111
      %p114 = scmp.ne.s32.totalorder %s97, %s113
      %p115 = scmp.eq.s32.totalorder %s21, 0
      %p116 = por %p114, %p115
      %p117 = scmp.le.s32.totalorder 1, %s15
      %p118 = scmp.lt.s32.totalorder %s15, 3
      %p119 = pnand %p117, %p118
      %p120 = pneg %p119
      // Predicated region
      $region9: #{tpu_custom_call.1} parent=5 // pred_check
        _
      $region10: #{tpu_custom_call.1} parent=5 // pred_check_branch
        %122 = sbr.rel (%p119) target = $region12
      $region11: #{tpu_custom_call.1} parent=5 // pred_region
        %s123 = ssub.s32 %s15, 1
        // Predicated region
        $region13: #{tpu_custom_call.1} parent=11 // pred_check
          %p124 = pneg %p62
        $region14: #{tpu_custom_call.1} parent=11 // pred_check_branch
          %126 = sbr.rel (%p124) target = $region16
        $region15: #{tpu_custom_call.1} parent=11 // pred_region
          _
        $region16: #{tpu_custom_call.1} parent=11 // pred_fallthru
          _
        // Predicated region
        $region17: #{tpu_custom_call.1} parent=11 // pred_check
          %p127 = pneg %p83
        $region18: #{tpu_custom_call.1} parent=11 // pred_check_branch
          %129 = sbr.rel (%p127) target = $region20
        $region19: #{tpu_custom_call.1} parent=11 // pred_region
          _
        $region20: #{tpu_custom_call.1} parent=11 // pred_fallthru
          _
      $region12: #{tpu_custom_call.1} parent=5 // pred_fallthru
        _
      %p130 = scmp.lt.s32.totalorder %s15, 2
      // Predicated region
      $region21: #{tpu_custom_call.1} parent=5 // pred_check
        %p131 = pneg %p130
      $region22: #{tpu_custom_call.1} parent=5 // pred_check_branch
        %133 = sbr.rel (%p131) target = $region24
      $region23: #{tpu_custom_call.1} parent=5 // pred_region
        // Predicated region
        $region25: #{tpu_custom_call.1} parent=23 // pred_check
          %p134 = pneg %p35
        $region26: #{tpu_custom_call.1} parent=23 // pred_check_branch
          %136 = sbr.rel (%p134) target = $region28
        $region27: #{tpu_custom_call.1} parent=23 // pred_region
          %s137 = sand.u32 %s25, 1
          %s138 = scalar_lea.sflag [#allocation3], %s137
          %s139 = sand.u32 %s25, 1
          %s140 = smul.addr %s139, 64
          %s141 = scalar_lea.vmem [#allocation2], %s140
          %s142 = smul.u32 4, %s15
          %144 = vsyncadd %s138, 0
          %s145 = smul.addr %s142, 2
          %s146 = smul.addr %s145, 8
          %s147 = scalar_lea.hbm %s0, %s146
          %s148 = sshll.u32 %s147, 4
          %s149 = int_to_ptr.hbm [resolvable:$true] %s148
          %s150 = sshll.u32 %s141, 4
          %s151 = int_to_ptr.vmem [resolvable:$true] %s150
          %156 = dma.hbm_to_vmem [thread:$0]  %s149, 1024, %s151, %s138, 128, 128, 8
        $region28: #{tpu_custom_call.1} parent=23 // pred_fallthru
          _
      $region24: #{tpu_custom_call.1} parent=5 // pred_fallthru
        _
      %p157 = scmp.le.s32.totalorder 1, %s15
      %p158 = scmp.lt.s32.totalorder %s15, 3
      %p159 = pnand %p157, %p158
      %p160 = pneg %p159
      // Predicated region
      $region29: #{tpu_custom_call.1} parent=5 // pred_check
        _
      $region30: #{tpu_custom_call.1} parent=5 // pred_check_branch
        %162 = sbr.rel (%p159) target = $region32
      $region31: #{tpu_custom_call.1} parent=5 // pred_region
        %s163 = ssub.s32 %s15, 1
        %s164 = sand.u32 %s28, 1
        %s165 = scalar_lea.sflag [#allocation3], %s164
        %s166 = sand.u32 %s28, 1
        %s167 = smul.addr %s166, 64
        %s168 = scalar_lea.vmem [#allocation2], %s167
        // Predicated region
        $region33: #{tpu_custom_call.1} parent=31 // pred_check
          %p169 = pneg %p41
        $region34: #{tpu_custom_call.1} parent=31 // pred_check_branch
          %171 = sbr.rel (%p169) target = $region36
        $region35: #{tpu_custom_call.1} parent=31 // pred_region
          %173 = dma.done %s165, 1024
        $region36: #{tpu_custom_call.1} parent=31 // pred_fallthru
          _
        %s174 = sand.u32 %s28, 1
        %s175 = scalar_lea.sflag [#allocation3], %s174
        %s176 = sand.u32 %s28, 1
        %s177 = smul.addr %s176, 64
        %s178 = scalar_lea.vmem [#allocation2], %s177
        %p179 = pneg %p41
        %p180 = pneg %p38
        %p181 = pneg %p62
        %p182 = pneg %p59
        %p183 = pneg %p83
        %p184 = pneg %p80
        %p185 = pneg %p109
        %p186 = pneg %p106
        %s187 = sand.u32 %s96, 1
        %s188 = scalar_lea.sflag [#allocation4], %s187
        %s189 = sand.u32 %s96, 1
        %s190 = smul.addr %s189, 128
        %s191 = scalar_lea.vmem [#allocation5], %s190
        %s192 = smul.u32 4, %s20
        %s193 = smul.u32 4, %s20
        %v194 = vld [vmem:[%s168] sm:$0xff]
        %v195 = vld [vmem:[%s168 + $0x8] sm:$0xff]
        %v196 = vld [vmem:[%s168 + $0x10] sm:$0xff]
        %v197 = vld [vmem:[%s168 + $0x18] sm:$0xff]
        %v198 = vld [vmem:[%s168 + $0x20] sm:$0xff]
        %v199 = vld [vmem:[%s168 + $0x28] sm:$0xff]
        %v200 = vld [vmem:[%s168 + $0x30] sm:$0xff]
        %v201 = vld [vmem:[%s168 + $0x38] sm:$0xff]
        %v202 = vld [vmem:[%s2] sm:$0xff]
        %v203 = vld [vmem:[%s2 + $0x8] sm:$0xff]
        %vm204 = vcmask 130048
        %v206 = vsel %vm204, %v194, 0
        %v209 = vsel %vm204, %v195, 0
        %211 = vmatpush.msra.mxu0 0.0
        %212 = vmatpush.msra.mxu0 0.0
        %213 = vmatpush.msra.mxu0 0.0
        %214 = vmatpush.msra.mxu0 0.0
        %215 = vmatpush.msra.mxu0 0.0
        %216 = vmatpush.msra.mxu0 0.0
        %217 = vmatpush.msra.mxu0 0.0
        %218 = vmatpush.msra.mxu0 0.0
        %219 = vmatpush.msra.mxu0 0.0
        %220 = vmatpush.msra.mxu0 0.0
        %221 = vmatpush.msra.mxu0 0.0
        %222 = vmatpush.msra.mxu0 0.0
        %223 = vmatpush.msra.mxu0 0.0
        %224 = vmatpush.msra.mxu0 0.0
        %225 = vmatpush.msra.mxu0 %v203
        %226 = vmatpush.msra.mxu0 %v202
        %227 = vmatmul.f32.gmra.mxu0 %v206
        %v228 = vpop.f32.mrf.mxu0
        %v229 = vadd.f32 0.0, %v228
        %230 = vmatmul.f32.gmra.mxu0 %v209
        %v231 = vpop.f32.mrf.mxu0
        %v232 = vadd.f32 0.0, %v231
        %233 = vdwg.mxu0
        %v235 = vsel %vm204, %v196, 0
        %v238 = vsel %vm204, %v197, 0
        %240 = vmatpush.msra.mxu0 0.0
        %241 = vmatpush.msra.mxu0 0.0
        %242 = vmatpush.msra.mxu0 0.0
        %243 = vmatpush.msra.mxu0 0.0
        %244 = vmatpush.msra.mxu0 0.0
        %245 = vmatpush.msra.mxu0 0.0
        %246 = vmatpush.msra.mxu0 0.0
        %247 = vmatpush.msra.mxu0 0.0
        %248 = vmatpush.msra.mxu0 0.0
        %249 = vmatpush.msra.mxu0 0.0
        %250 = vmatpush.msra.mxu0 0.0
        %251 = vmatpush.msra.mxu0 0.0
        %252 = vmatpush.msra.mxu0 0.0
        %253 = vmatpush.msra.mxu0 0.0
        %254 = vmatpush.msra.mxu0 %v203
        %255 = vmatpush.msra.mxu0 %v202
        %256 = vmatmul.f32.gmra.mxu0 %v235
        %v257 = vpop.f32.mrf.mxu0
        %v258 = vadd.f32 0.0, %v257
        %259 = vmatmul.f32.gmra.mxu0 %v238
        %v260 = vpop.f32.mrf.mxu0
        %v261 = vadd.f32 0.0, %v260
        %262 = vdwg.mxu0
        %v264 = vsel %vm204, %v198, 0
        %v267 = vsel %vm204, %v199, 0
        %269 = vmatpush.msra.mxu0 0.0
        %270 = vmatpush.msra.mxu0 0.0
        %271 = vmatpush.msra.mxu0 0.0
        %272 = vmatpush.msra.mxu0 0.0
        %273 = vmatpush.msra.mxu0 0.0
        %274 = vmatpush.msra.mxu0 0.0
        %275 = vmatpush.msra.mxu0 0.0
        %276 = vmatpush.msra.mxu0 0.0
        %277 = vmatpush.msra.mxu0 0.0
        %278 = vmatpush.msra.mxu0 0.0
        %279 = vmatpush.msra.mxu0 0.0
        %280 = vmatpush.msra.mxu0 0.0
        %281 = vmatpush.msra.mxu0 0.0
        %282 = vmatpush.msra.mxu0 0.0
        %283 = vmatpush.msra.mxu0 %v203
        %284 = vmatpush.msra.mxu0 %v202
        %285 = vmatmul.f32.gmra.mxu0 %v264
        %v286 = vpop.f32.mrf.mxu0
        %v287 = vadd.f32 0.0, %v286
        %288 = vmatmul.f32.gmra.mxu0 %v267
        %v289 = vpop.f32.mrf.mxu0
        %v290 = vadd.f32 0.0, %v289
        %291 = vdwg.mxu0
        %v293 = vsel %vm204, %v200, 0
        %v296 = vsel %vm204, %v201, 0
        %298 = vmatpush.msra.mxu0 0.0
        %299 = vmatpush.msra.mxu0 0.0
        %300 = vmatpush.msra.mxu0 0.0
        %301 = vmatpush.msra.mxu0 0.0
        %302 = vmatpush.msra.mxu0 0.0
        %303 = vmatpush.msra.mxu0 0.0
        %304 = vmatpush.msra.mxu0 0.0
        %305 = vmatpush.msra.mxu0 0.0
        %306 = vmatpush.msra.mxu0 0.0
        %307 = vmatpush.msra.mxu0 0.0
        %308 = vmatpush.msra.mxu0 0.0
        %309 = vmatpush.msra.mxu0 0.0
        %310 = vmatpush.msra.mxu0 0.0
        %311 = vmatpush.msra.mxu0 0.0
        %312 = vmatpush.msra.mxu0 %v203
        %313 = vmatpush.msra.mxu0 %v202
        %314 = vmatmul.f32.gmra.mxu0 %v293
        %v315 = vpop.f32.mrf.mxu0
        %v316 = vadd.f32 0.0, %v315
        %317 = vmatmul.f32.gmra.mxu0 %v296
        %v318 = vpop.f32.mrf.mxu0
        %v319 = vadd.f32 0.0, %v318
        %320 = vdwg.mxu0
        %v321 = vld [vmem:[%s1] sm:$0xff]
        %v322 = vld [vmem:[%s1 + $0x8] sm:$0xff]
        %v323 = vld [vmem:[%s1 + $0x10] sm:$0xff]
        %v324 = vld [vmem:[%s1 + $0x18] sm:$0xff]
        %v326 = vsel %vm204, %v321, 0
        %v329 = vsel %vm204, %v322, 0
        %v332 = vsel %vm204, %v323, 0
        %v335 = vsel %vm204, %v324, 0
        %337 = vmatpush.msra.mxu0 0.0
        %338 = vmatpush.msra.mxu0 0.0
        %339 = vmatpush.msra.mxu0 0.0
        %340 = vmatpush.msra.mxu0 0.0
        %341 = vmatpush.msra.mxu0 0.0
        %342 = vmatpush.msra.mxu0 0.0
        %343 = vmatpush.msra.mxu0 0.0
        %344 = vmatpush.msra.mxu0 0.0
        %345 = vmatpush.msra.mxu0 0.0
        %346 = vmatpush.msra.mxu0 0.0
        %347 = vmatpush.msra.mxu0 0.0
        %348 = vmatpush.msra.mxu0 0.0
        %349 = vmatpush.msra.mxu0 0.0
        %350 = vmatpush.msra.mxu0 0.0
        %351 = vmatpush.msra.mxu0 %v232
        %352 = vmatpush.msra.mxu0 %v229
        %353 = vmatmul.f32.gmra.mxu0 %v326
        %v354 = vpop.f32.mrf.mxu0
        %v355 = vadd.f32 0.0, %v354
        %356 = vmatmul.f32.gmra.mxu0 %v329
        %v357 = vpop.f32.mrf.mxu0
        %v358 = vadd.f32 0.0, %v357
        %359 = vmatmul.f32.gmra.mxu0 %v332
        %v360 = vpop.f32.mrf.mxu0
        %v361 = vadd.f32 0.0, %v360
        %362 = vmatmul.f32.gmra.mxu0 %v335
        %v363 = vpop.f32.mrf.mxu0
        %v364 = vadd.f32 0.0, %v363
        %365 = vdwg.mxu0
        %366 = vmatpush.msra.mxu0 0.0
        %367 = vmatpush.msra.mxu0 0.0
        %368 = vmatpush.msra.mxu0 0.0
        %369 = vmatpush.msra.mxu0 0.0
        %370 = vmatpush.msra.mxu0 0.0
        %371 = vmatpush.msra.mxu0 0.0
        %372 = vmatpush.msra.mxu0 0.0
        %373 = vmatpush.msra.mxu0 0.0
        %374 = vmatpush.msra.mxu0 0.0
        %375 = vmatpush.msra.mxu0 0.0
        %376 = vmatpush.msra.mxu0 0.0
        %377 = vmatpush.msra.mxu0 0.0
        %378 = vmatpush.msra.mxu0 0.0
        %379 = vmatpush.msra.mxu0 0.0
        %380 = vmatpush.msra.mxu0 %v261
        %381 = vmatpush.msra.mxu0 %v258
        %382 = vmatmul.f32.gmra.mxu0 %v326
        %v383 = vpop.f32.mrf.mxu0
        %v384 = vadd.f32 0.0, %v383
        %385 = vmatmul.f32.gmra.mxu0 %v329
        %v386 = vpop.f32.mrf.mxu0
        %v387 = vadd.f32 0.0, %v386
        %388 = vmatmul.f32.gmra.mxu0 %v332
        %v389 = vpop.f32.mrf.mxu0
        %v390 = vadd.f32 0.0, %v389
        %391 = vmatmul.f32.gmra.mxu0 %v335
        %v392 = vpop.f32.mrf.mxu0
        %v393 = vadd.f32 0.0, %v392
        %394 = vdwg.mxu0
        %395 = vmatpush.msra.mxu0 0.0
        %396 = vmatpush.msra.mxu0 0.0
        %397 = vmatpush.msra.mxu0 0.0
        %398 = vmatpush.msra.mxu0 0.0
        %399 = vmatpush.msra.mxu0 0.0
        %400 = vmatpush.msra.mxu0 0.0
        %401 = vmatpush.msra.mxu0 0.0
        %402 = vmatpush.msra.mxu0 0.0
        %403 = vmatpush.msra.mxu0 0.0
        %404 = vmatpush.msra.mxu0 0.0
        %405 = vmatpush.msra.mxu0 0.0
        %406 = vmatpush.msra.mxu0 0.0
        %407 = vmatpush.msra.mxu0 0.0
        %408 = vmatpush.msra.mxu0 0.0
        %409 = vmatpush.msra.mxu0 %v290
        %410 = vmatpush.msra.mxu0 %v287
        %411 = vmatmul.f32.gmra.mxu0 %v326
        %v412 = vpop.f32.mrf.mxu0
        %v413 = vadd.f32 0.0, %v412
        %414 = vmatmul.f32.gmra.mxu0 %v329
        %v415 = vpop.f32.mrf.mxu0
        %v416 = vadd.f32 0.0, %v415
        %417 = vmatmul.f32.gmra.mxu0 %v332
        %v418 = vpop.f32.mrf.mxu0
        %v419 = vadd.f32 0.0, %v418
        %420 = vmatmul.f32.gmra.mxu0 %v335
        %v421 = vpop.f32.mrf.mxu0
        %v422 = vadd.f32 0.0, %v421
        %423 = vdwg.mxu0
        %424 = vmatpush.msra.mxu0 0.0
        %425 = vmatpush.msra.mxu0 0.0
        %426 = vmatpush.msra.mxu0 0.0
        %427 = vmatpush.msra.mxu0 0.0
        %428 = vmatpush.msra.mxu0 0.0
        %429 = vmatpush.msra.mxu0 0.0
        %430 = vmatpush.msra.mxu0 0.0
        %431 = vmatpush.msra.mxu0 0.0
        %432 = vmatpush.msra.mxu0 0.0
        %433 = vmatpush.msra.mxu0 0.0
        %434 = vmatpush.msra.mxu0 0.0
        %435 = vmatpush.msra.mxu0 0.0
        %436 = vmatpush.msra.mxu0 0.0
        %437 = vmatpush.msra.mxu0 0.0
        %438 = vmatpush.msra.mxu0 %v319
        %439 = vmatpush.msra.mxu0 %v316
        %440 = vmatmul.f32.gmra.mxu0 %v326
        %v441 = vpop.f32.mrf.mxu0
        %v442 = vadd.f32 0.0, %v441
        %443 = vmatmul.f32.gmra.mxu0 %v329
        %v444 = vpop.f32.mrf.mxu0
        %v445 = vadd.f32 0.0, %v444
        %446 = vmatmul.f32.gmra.mxu0 %v332
        %v447 = vpop.f32.mrf.mxu0
        %v448 = vadd.f32 0.0, %v447
        %449 = vmatmul.f32.gmra.mxu0 %v335
        %v450 = vpop.f32.mrf.mxu0
        %v451 = vadd.f32 0.0, %v450
        %452 = vdwg.mxu0
        %vm453 = vcmask 261120
        %454 = vst.msk [vmem:[%s191] sm:$0xff] %vm453, %v355
        %455 = vst.msk [vmem:[%s191 + $0x8] sm:$0xff] %vm453, %v358
        %456 = vst.msk [vmem:[%s191 + $0x10] sm:$0xff] %vm453, %v361
        %457 = vst.msk [vmem:[%s191 + $0x18] sm:$0xff] %vm453, %v364
        %458 = vst.msk [vmem:[%s191 + $0x20] sm:$0xff] %vm453, %v384
        %459 = vst.msk [vmem:[%s191 + $0x28] sm:$0xff] %vm453, %v387
        %460 = vst.msk [vmem:[%s191 + $0x30] sm:$0xff] %vm453, %v390
        %461 = vst.msk [vmem:[%s191 + $0x38] sm:$0xff] %vm453, %v393
        %462 = vst.msk [vmem:[%s191 + $0x40] sm:$0xff] %vm453, %v413
        %463 = vst.msk [vmem:[%s191 + $0x48] sm:$0xff] %vm453, %v416
        %464 = vst.msk [vmem:[%s191 + $0x50] sm:$0xff] %vm453, %v419
        %465 = vst.msk [vmem:[%s191 + $0x58] sm:$0xff] %vm453, %v422
        %466 = vst.msk [vmem:[%s191 + $0x60] sm:$0xff] %vm453, %v442
        %467 = vst.msk [vmem:[%s191 + $0x68] sm:$0xff] %vm453, %v445
        %468 = vst.msk [vmem:[%s191 + $0x70] sm:$0xff] %vm453, %v448
        %469 = vst.msk [vmem:[%s191 + $0x78] sm:$0xff] %vm453, %v451
        %s470 = sand.u32 %s96, 1
        %s471 = scalar_lea.sflag [#allocation4], %s470
        %s472 = sand.u32 %s96, 1
        %s473 = smul.addr %s472, 128
        %s474 = scalar_lea.vmem [#allocation5], %s473
        // Predicated region
        $region37: #{tpu_custom_call.1} parent=31 // pred_check
          %p475 = pneg %p106
        $region38: #{tpu_custom_call.1} parent=31 // pred_check_branch
          %477 = sbr.rel (%p475) target = $region40
        $region39: #{tpu_custom_call.1} parent=31 // pred_region
          %s478 = smul.u32 4, %s20
          %480 = vsyncadd %s471, 0
          %s481 = smul.addr %s478, 4
          %s482 = smul.addr %s481, 8
          %s483 = scalar_lea.hbm %s3, %s482
          %s484 = sshll.u32 %s474, 4
          %s485 = int_to_ptr.vmem [resolvable:$true] %s484
          %s486 = sshll.u32 %s483, 4
          %s487 = int_to_ptr.hbm [resolvable:$true] %s486
          %492 = dma.vmem_to_hbm [thread:$0]  %s485, 2048, %s487, %s471, 128, 128, 8
        $region40: #{tpu_custom_call.1} parent=31 // pred_fallthru
          _
      $region32: #{tpu_custom_call.1} parent=5 // pred_fallthru
        _
      %p493 = scmp.le.s32.totalorder 2, %s15
      // Predicated region
      $region41: #{tpu_custom_call.1} parent=5 // pred_check
        %p494 = pneg %p493
      $region42: #{tpu_custom_call.1} parent=5 // pred_check_branch
        %496 = sbr.rel (%p494) target = $region44
      $region43: #{tpu_custom_call.1} parent=5 // pred_region
        %s497 = ssub.s32 %s15, 2
        // Predicated region
        $region45: #{tpu_custom_call.1} parent=43 // pred_check
          %p498 = pneg %p112
        $region46: #{tpu_custom_call.1} parent=43 // pred_check_branch
          %500 = sbr.rel (%p498) target = $region48
        $region47: #{tpu_custom_call.1} parent=43 // pred_region
          %s501 = sand.u32 %s97, 1
          %s502 = scalar_lea.sflag [#allocation4], %s501
          %s503 = sand.u32 %s97, 1
          %s504 = smul.addr %s503, 128
          %s505 = scalar_lea.vmem [#allocation5], %s504
          %507 = dma.done %s502, 2048
        $region48: #{tpu_custom_call.1} parent=43 // pred_fallthru
          _
      $region44: #{tpu_custom_call.1} parent=5 // pred_fallthru
        _
    $region6: #{tpu_custom_call.1} parent=1 // loop_footer
      %s19 = sadd.s32 1, %s15
    $region7: #{tpu_custom_call.1} parent=1 // loop_footer_branch
      %14 = sbr.rel target = $region3
    $region8: #{tpu_custom_call.1} parent=1 // loop_exit
      _
    %508 = vsyncpa [#allocation3], 1
    %s509 = scalar_lea.sflag [#allocation3], 1
    %510 = vsyncpa %s509, 1
    %511 = vsyncpa [#allocation4], 1
    %s512 = scalar_lea.sflag [#allocation4], 1
    %513 = vsyncpa %s512, 1

</llo_original>
